<compile_context>
chip_gen: v6e
topology: v6e:2x2x1
jax: 0.10.0
libtpu: 0.0.40
codegen_flags: <defaults>
</compile_context>

<pallas_src>
import functools
import math

import jax
import jax.numpy as jnp
from jax import lax
from jax.experimental import pallas as pl
from jax.experimental.pallas import tpu as pltpu

LANES = 128
MAX_BLOCK_ROWS = 4096   # 4096 x 128 x 4B = 2 MiB per f32 input tile (multiple of 32)
LN2 = math.log(2.0)


def celdice_partials_kernel(p_ref, t_ref, out_ref, *, block_rows,
                            blocks_per_split, valid_rows, needs_mask):
    """Accumulates per-lane partial sums [bce, p*t, p, t] into out_ref (4, 128)."""
    c = pl.program_id(0)   # parallel split (one per TensorCore on v7x)
    i = pl.program_id(1)   # sequential reduction step within the split

    @pl.when(i == 0)
    def _():
        out_ref[...] = jnp.zeros_like(out_ref)

    p = p_ref[...].astype(jnp.float32)   # (block_rows, 128) logits
    t = t_ref[...].astype(jnp.float32)   # (block_rows, 128) targets

    if needs_mask:
        # Only emitted when the row count is ragged: rows past the end of the
        # real array (unspecified boundary-DMA contents) are select-zeroed.
        g = c * blocks_per_split + i                 # global block index
        limit = valid_rows - g * block_rows          # #valid rows in this block
        row = lax.broadcasted_iota(jnp.int32, (block_rows, 1), 0)
        keep = row < limit
        p = jnp.where(keep, p, 0.0)
        t = jnp.where(keep, t, 0.0)

    pt = p * t
    # Numerically-stable BCEWithLogits element term:
    #   max(x, 0) - x*y + log(1 + exp(-|x|))
    bce = jnp.maximum(p, 0.0) - pt + jnp.log1p(jnp.exp(-jnp.abs(p)))
    if needs_mask:
        bce = jnp.where(keep, bce, 0.0)   # masked rows contribute exactly 0

    # TODO(synk): a two-stage (block_rows//8, 8, 128) VALU reduction could shave
    # the per-step sublane reduce; only worth it if a bundle dump shows this
    # kernel compute-bound (v7x) rather than HBM-bound.
    partial = jnp.concatenate(
        [
            jnp.sum(bce, axis=0, keepdims=True),
            jnp.sum(pt, axis=0, keepdims=True),
            jnp.sum(p, axis=0, keepdims=True),
            jnp.sum(t, axis=0, keepdims=True),
        ],
        axis=0,
    )
    out_ref[...] += partial


def celdice_loss(y_pred_logits, y_true, alpha: float = 0.2):
    """Pallas implementation of CELDice.forward."""
    p = jnp.reshape(y_pred_logits, (-1,))
    t = jnp.reshape(y_true, (-1,))

    # Keep HBM streams narrow: floats stay native (widened to f32 in-kernel),
    # bool targets travel as int8; other integer targets are widened once here.
    if not jnp.issubdtype(p.dtype, jnp.floating):
        p = p.astype(jnp.float32)
    if t.dtype == jnp.bool_:
        t = t.astype(jnp.int8)
    elif not jnp.issubdtype(t.dtype, jnp.floating) and t.dtype != jnp.int8:
        t = t.astype(jnp.float32)

    n = p.shape[0]
    lane_pad = (-n) % LANES
    if lane_pad:   # only a ragged final 128-lane row forces a (tiny) pad copy
        p = jnp.pad(p, (0, lane_pad))
        t = jnp.pad(t, (0, lane_pad))
    rows = (n + lane_pad) // LANES
    p2 = p.reshape(rows, LANES)
    t2 = t.reshape(rows, LANES)

    if rows <= MAX_BLOCK_ROWS:
        block_rows = rows            # one full-extent block: no alignment constraint
    else:
        block_rows = MAX_BLOCK_ROWS  # multiple of 32: safe tiling for f32/bf16/int8
    blocks = pl.cdiv(rows, block_rows)

    # Leading "parallel" axis feeds both TensorCores on v7x; on 1-TC chips it is
    # a serial outer loop.  Skip it for tiny odd grids where the (at most one)
    # masked phantom block would be a large relative overhead.
    nsplit = 2 if (blocks % 2 == 0 or blocks >= 8) else 1
    bps = pl.cdiv(blocks, nsplit)
    total_blocks = nsplit * bps
    needs_mask = total_blocks * block_rows != rows

    def in_index(c, i):
        g = c * bps + i
        return (jnp.minimum(g, blocks - 1), 0)   # clamp phantom blocks onto real data

    kernel = functools.partial(
        celdice_partials_kernel,
        block_rows=block_rows,
        blocks_per_split=bps,
        valid_rows=rows,
        needs_mask=needs_mask,
    )

    partials = pl.pallas_call(
        kernel,
        out_shape=jax.ShapeDtypeStruct((nsplit, 4, LANES), jnp.float32),
        grid=(nsplit, bps),
        in_specs=[
            pl.BlockSpec((block_rows, LANES), in_index),
            pl.BlockSpec((block_rows, LANES), in_index),
        ],
        out_specs=pl.BlockSpec((None, 4, LANES), lambda c, i: (c, 0, 0)),
        compiler_params=pltpu.CompilerParams(
            dimension_semantics=("parallel", "arbitrary"),
        ),
    )(p2, t2)

    # Final scalar math in the wrapper (cheap, and lets the kernel stay a pure
    # per-core partial reduction).
    sums = jnp.sum(partials, axis=(0, 2))   # [bce_sum, intersection, sum_p, sum_t]
    # Zero-filled lane padding contributes exactly log(2) per element to BCE;
    # all other padded / phantom rows are masked to zero inside the kernel.
    bce_sum = sums[0] - lane_pad * LN2
    loss = (1.0 - alpha) * (bce_sum / n)
    if alpha:   # static Python branch, mirrors `if self.alpha:`
        eps = 1e-6
        dsc = (2.0 * sums[1] + eps) / (sums[2] + sums[3] + eps)
        loss = loss - alpha * jnp.log(dsc)
    return loss


def celdice_reference(y_pred_logits, y_true, alpha: float = 0.2):
    """Pure-JAX reference mirroring the PyTorch module."""
    p = jnp.reshape(y_pred_logits, (-1,)).astype(jnp.float32)
    t = jnp.reshape(y_true, (-1,)).astype(jnp.float32)
    bce = jnp.mean(jnp.maximum(p, 0.0) - p * t + jnp.log1p(jnp.exp(-jnp.abs(p))))
    loss = (1.0 - alpha) * bce
    if alpha:
        eps = 1e-6
        inter = jnp.sum(p * t)
        union = jnp.sum(p) + jnp.sum(t)
        dsc = (2.0 * inter + eps) / (union + eps)
        loss = loss - alpha * jnp.log(dsc)
    return loss


if __name__ == "__main__":
    key = jax.random.PRNGKey(0)
    k1, k2 = jax.random.split(key)
    # Shapes consistent with a segmentation logit map: (N, C, H, W) = (2, 4, 16, 16)
    y_pred_logits = jax.random.normal(k1, (2, 4, 16, 16), dtype=jnp.float32) * 2.0 + 1.0
    y_true = jax.random.uniform(k2, (2, 4, 16, 16)) > 0.5   # bool labels -> int8 stream

    loss = celdice_loss(y_pred_logits, y_true, alpha=0.2)
    loss = jax.block_until_ready(loss)

    ref = celdice_reference(y_pred_logits, y_true, alpha=0.2)
    assert jnp.allclose(loss, ref, rtol=1e-5, atol=1e-5), (loss, ref)

    print("KERNEL_OK")
</pallas_src>

<mosaic_0001>
module attributes {stable_mosaic.version = 11 : i64} {
  func.func @celdice_partials_kernel(%arg0: i32, %arg1: i32, %arg2: memref<16x128xf32, #tpu.memory_space<vmem>>, %arg3: memref<16x128xi8, #tpu.memory_space<vmem>>, %arg4: memref<1x4x128xf32, #tpu.memory_space<vmem>>) attributes {dimension_semantics = [#tpu.dimension_semantics<parallel>, #tpu.dimension_semantics<arbitrary>], iteration_bounds = array<i64: 1, 1>, scalar_prefetch = 0 : i64, scratch_operands = 0 : i64, tpu.core_type = #tpu.core_type<tc>, window_params = [{transform_indices = @transform_0, window_bounds = array<i64: 16, 128>}, {transform_indices = @transform_1, window_bounds = array<i64: 16, 128>}, {transform_indices = @transform_2, window_bounds = array<i64: 1, 4, 128>}]} {
    %c0_i32 = arith.constant 0 : i32
    %0 = arith.cmpi eq, %arg1, %c0_i32 : i32
    %1 = arith.extui %0 : i1 to i32
    %c0_i32_0 = arith.constant 0 : i32
    %2 = arith.cmpi ne, %1, %c0_i32_0 : i32
    scf.if %2 {
      %cst_15 = arith.constant 0.000000e+00 : f32
      %31 = vector.broadcast %cst_15 : f32 to vector<4x128xf32>
      %c0_16 = arith.constant 0 : index
      %c0_17 = arith.constant 0 : index
      %c0_18 = arith.constant 0 : index
      %32 = vector.load %arg4[%c0_16, %c0_17, %c0_18] : memref<1x4x128xf32, #tpu.memory_space<vmem>>, vector<1x4x128xf32>
      %33 = vector.shape_cast %32 : vector<1x4x128xf32> to vector<4x128xf32>
      %34 = vector.shape_cast %31 : vector<4x128xf32> to vector<1x4x128xf32>
      tpu.vector_store %arg4[%c0_16, %c0_17, %c0_18], %34 {strides = array<i32>} : memref<1x4x128xf32, #tpu.memory_space<vmem>>, vector<1x4x128xf32>,
    } else {
    }
    %c0 = arith.constant 0 : index
    %c0_1 = arith.constant 0 : index
    %3 = vector.load %arg2[%c0, %c0_1] : memref<16x128xf32, #tpu.memory_space<vmem>>, vector<16x128xf32>
    %c0_2 = arith.constant 0 : index
    %c0_3 = arith.constant 0 : index
    %4 = vector.load %arg3[%c0_2, %c0_3] : memref<16x128xi8, #tpu.memory_space<vmem>>, vector<16x128xi8>
    %5 = arith.sitofp %4 : vector<16x128xi8> to vector<16x128xf32>
    %6 = arith.mulf %3, %5 : vector<16x128xf32>
    %cst = arith.constant 0.000000e+00 : f32
    %7 = vector.broadcast %cst : f32 to vector<16x128xf32>
    %8 = arith.maximumf %3, %7 : vector<16x128xf32>
    %9 = arith.subf %8, %6 : vector<16x128xf32>
    %10 = math.absf %3 : vector<16x128xf32>
    %cst_4 = arith.constant 0.000000e+00 : f32
    %11 = vector.broadcast %cst_4 : f32 to vector<16x128xf32>
    %12 = arith.subf %11, %10 : vector<16x128xf32>
    %13 = math.exp %12 : vector<16x128xf32>
    %14 = math.log1p %13 : vector<16x128xf32>
    %15 = arith.addf %9, %14 : vector<16x128xf32>
    %cst_5 = arith.constant dense<0.000000e+00> : vector<128xf32>
    %16 = vector.multi_reduction <add>, %15, %cst_5 [0] : vector<16x128xf32> to vector<128xf32>
    %17 = vector.shape_cast %16 : vector<128xf32> to vector<1x128xf32>
    %cst_6 = arith.constant dense<0.000000e+00> : vector<128xf32>
    %18 = vector.multi_reduction <add>, %6, %cst_6 [0] : vector<16x128xf32> to vector<128xf32>
    %19 = vector.shape_cast %18 : vector<128xf32> to vector<1x128xf32>
    %cst_7 = arith.constant dense<0.000000e+00> : vector<128xf32>
    %20 = vector.multi_reduction <add>, %3, %cst_7 [0] : vector<16x128xf32> to vector<128xf32>
    %21 = vector.shape_cast %20 : vector<128xf32> to vector<1x128xf32>
    %cst_8 = arith.constant dense<0.000000e+00> : vector<128xf32>
    %22 = vector.multi_reduction <add>, %5, %cst_8 [0] : vector<16x128xf32> to vector<128xf32>
    %23 = vector.shape_cast %22 : vector<128xf32> to vector<1x128xf32>
    %24 = tpu.concatenate %17, %19, %21, %23 in 0 : vector<1x128xf32>, vector<1x128xf32>, vector<1x128xf32>, vector<1x128xf32> -> vector<4x128xf32>
    %c0_9 = arith.constant 0 : index
    %c0_10 = arith.constant 0 : index
    %c0_11 = arith.constant 0 : index
    %25 = vector.load %arg4[%c0_9, %c0_10, %c0_11] : memref<1x4x128xf32, #tpu.memory_space<vmem>>, vector<1x4x128xf32>
    %26 = vector.shape_cast %25 : vector<1x4x128xf32> to vector<4x128xf32>
    %27 = arith.addf %26, %24 : vector<4x128xf32>
    %c0_12 = arith.constant 0 : index
    %c0_13 = arith.constant 0 : index
    %c0_14 = arith.constant 0 : index
    %28 = vector.load %arg4[%c0_12, %c0_13, %c0_14] : memref<1x4x128xf32, #tpu.memory_space<vmem>>, vector<1x4x128xf32>
    %29 = vector.shape_cast %28 : vector<1x4x128xf32> to vector<4x128xf32>
    %30 = vector.shape_cast %27 : vector<4x128xf32> to vector<1x4x128xf32>
    tpu.vector_store %arg4[%c0_12, %c0_13, %c0_14], %30 {strides = array<i32>} : memref<1x4x128xf32, #tpu.memory_space<vmem>>, vector<1x4x128xf32>,
    return
  }
  func.func @transform_0(%arg0: i32, %arg1: i32) -> (i32, i32) {
    %c1_i32 = arith.constant 1 : i32
    %0 = arith.muli %arg0, %c1_i32 : i32
    %1 = arith.addi %0, %arg1 : i32
    %c0_i32 = arith.constant 0 : i32
    %2 = arith.minsi %1, %c0_i32 : i32
    %c0_i32_0 = arith.constant 0 : i32
    %c0_i32_1 = arith.constant 0 : i32
    return %2, %c0_i32_0 : i32, i32
  }
  func.func @transform_1(%arg0: i32, %arg1: i32) -> (i32, i32) {
    %c1_i32 = arith.constant 1 : i32
    %0 = arith.muli %arg0, %c1_i32 : i32
    %1 = arith.addi %0, %arg1 : i32
    %c0_i32 = arith.constant 0 : i32
    %2 = arith.minsi %1, %c0_i32 : i32
    %c0_i32_0 = arith.constant 0 : i32
    %c0_i32_1 = arith.constant 0 : i32
    return %2, %c0_i32_0 : i32, i32
  }
  func.func @transform_2(%arg0: i32, %arg1: i32) -> (i32, i32, i32) {
    %c0_i32 = arith.constant 0 : i32
    %c0_i32_0 = arith.constant 0 : i32
    %c0_i32_1 = arith.constant 0 : i32
    return %arg0, %c0_i32, %c0_i32_0 : i32, i32, i32
  }
}

</mosaic_0001>

<llo_original>
// kernel: tpu_custom_call.1
$region0: #{tpu_custom_call.1}
  #allocation0 [shape = 'u32[]', space=smem, size = 0x4, offset = 0x4, fixed_abs, tag = 'smem constant byte address 0x4 - core index']
  #allocation1 [shape = 'u32[144,128]{1,0:T(1,128)}', space=vmem, size = 0x12000, scoped, tag = 'internal scratch']
  %s0 = inlined_call_operand.hbm [shape: f32[16,128], index: 0, kind: input, shape index: {}]
  %s1 = inlined_call_operand.hbm [shape: s8[16,128], index: 1, kind: input, shape index: {}]
  %s2 = inlined_call_operand.hbm [shape: f32[1,4,128], index: 2, kind: output, shape index: {}]
  %s3 = sld [smem:[#allocation0]]
  $region30: #{tpu_custom_call.1} parent=0
    _
  %s5 = ssub.s32 1, %s3
  %s6 = scalar_select 0, %s5, %s3
  $region1: #{tpu_custom_call.1} parent=0
    #allocation2 [shape = 'u8[8192]{0}', space=vmem, size = 0x2000, scoped, tag = 'input window, operand 0, single buffered']
    #allocation3 [shape = 's32[1]{0}', space=sflag, size = 0x4, scoped, tag = 'scoped memory for tpu_custom_call.1']
    #allocation4 [shape = 's32[1]{0}', space=sflag, size = 0x4, scoped, tag = 'scoped memory for tpu_custom_call.1']
    #allocation5 [shape = 'u8[2048]{0}', space=vmem, size = 0x800, scoped, tag = 'input window, operand 1, single buffered']
    #allocation6 [shape = 's32[1]{0}', space=sflag, size = 0x4, scoped, tag = 'scoped memory for tpu_custom_call.1']
    #allocation7 [shape = 'u8[2048]{0}', space=vmem, size = 0x800, scoped, tag = 'output window, operand 0, single buffered']
    %7 = vsyncpa [#allocation3], 0
    %8 = vsyncpa [#allocation6], 0
    %9 = vsyncpa [#allocation4], 0
    // Predicated region
    $region2: #{tpu_custom_call.1} parent=1 // pred_check
      _
    $region3: #{tpu_custom_call.1} parent=1 // pred_check_branch
      %11 = sbr.rel (0) target = $region5
    $region4: #{tpu_custom_call.1} parent=1 // pred_region
      %s12 = sadd.s32 0, 0
      %p13 = scmp.lt.s32.totalorder %s12, 0
      %s14 = scalar_select %p13, %s12, 0
      %s15 = smul.u32 2, %s14
      %s17 = ssub.s32 256, 256
      %18 = vsyncadd [#allocation3], %s17
      %s19 = smul.addr %s15, 128
      %s20 = scalar_lea.hbm %s0, %s19
      %s21 = sshll.u32 [#allocation2], 4
      %s22 = int_to_ptr.vmem [resolvable:$true] %s21
      %27 = dma.hbm_to_vmem [thread:$0]  %s20, 256, %s22, [#allocation3], 128, 128, 8
    $region5: #{tpu_custom_call.1} parent=1 // pred_fallthru
      _
    // Predicated region
    $region6: #{tpu_custom_call.1} parent=1 // pred_check
      _
    $region7: #{tpu_custom_call.1} parent=1 // pred_check_branch
      %29 = sbr.rel (0) target = $region9
    $region8: #{tpu_custom_call.1} parent=1 // pred_region
      %s30 = sadd.s32 0, 0
      %p31 = scmp.lt.s32.totalorder %s30, 0
      %s32 = scalar_select %p31, %s30, 0
      %s33 = smul.u32 2, %s32
      %s35 = ssub.s32 64, 64
      %36 = vsyncadd [#allocation6], %s35
      %s37 = smul.addr %s33, 32
      %s38 = scalar_lea.hbm %s1, %s37
      %s39 = sshll.u32 [#allocation5], 4
      %s40 = int_to_ptr.vmem [resolvable:$true] %s39
      %45 = dma.hbm_to_vmem [thread:$0]  %s38, 64, %s40, [#allocation6], 32, 32, 2
    $region9: #{tpu_custom_call.1} parent=1 // pred_fallthru
      _
    // Predicated region
    $region10: #{tpu_custom_call.1} parent=1 // pred_check
      _
    $region11: #{tpu_custom_call.1} parent=1 // pred_check_branch
      %47 = sbr.rel (0) target = $region13
    $region12: #{tpu_custom_call.1} parent=1 // pred_region
      %48 = dma.done [#allocation3], 256
    $region13: #{tpu_custom_call.1} parent=1 // pred_fallthru
      _
    // Predicated region
    $region14: #{tpu_custom_call.1} parent=1 // pred_check
      _
    $region15: #{tpu_custom_call.1} parent=1 // pred_check_branch
      %50 = sbr.rel (0) target = $region17
    $region16: #{tpu_custom_call.1} parent=1 // pred_region
      %51 = dma.done [#allocation6], 64
    $region17: #{tpu_custom_call.1} parent=1 // pred_fallthru
      _
    %s52 = sadd.s32 0, 0
    %p53 = scmp.lt.s32.totalorder %s52, 0
    %s54 = scalar_select %p53, %s52, 0
    %s55 = smul.u32 2, %s54
    %s56 = sadd.s32 0, 0
    %p57 = scmp.lt.s32.totalorder %s56, 0
    %s58 = scalar_select %p57, %s56, 0
    %s59 = smul.u32 2, %s58
    %p60 = scmp.eq.s32.totalorder 0, 0
    // Predicated region
    $region18: #{tpu_custom_call.1} parent=1 // pred_check
      %p61 = pneg %p60
    $region19: #{tpu_custom_call.1} parent=1 // pred_check_branch
      %63 = sbr.rel (%p61) target = $region21
    $region20: #{tpu_custom_call.1} parent=1 // pred_region
      %64 = vst [vmem:[#allocation7] sm:$0xf] 0.0
    $region21: #{tpu_custom_call.1} parent=1 // pred_fallthru
      _
    %v65 = vld [vmem:[#allocation2] sm:$0xff]
    %v66 = vld [vmem:[#allocation2 + $0x8] sm:$0xff]
    %v67 = vld [vmem:[#allocation5] sm:$0x3]
    %v68 = vld [vmem:[#allocation5 + $0x2] sm:$0x3]
    %v69 = vunpack.c.0.s8 %v67
    %v70 = vunpack.c.0.s8 %v68
    %v71 = vcvt.s32.f32 %v69
    %v72 = vcvt.s32.f32 %v70
    %v73 = vmul.f32 %v65, %v71
    %v74 = vmul.f32 %v66, %v72
    %v75 = vmax.f32 %v65, 0.0
    %v76 = vmax.f32 %v66, 0.0
    %v77 = vsub.f32 %v75, %v73
    %v78 = vsub.f32 %v76, %v74
    %v79 = vand.u32 2147483647, %v65
    %v80 = vand.u32 2147483647, %v66
    %v81 = vsub.f32 0.0, %v79
    %v82 = vsub.f32 0.0, %v80
    %v83 = vmul.f32 %v81, 1.442695
    %v84 = vpow.pop %v83
    %v85 = vmul.f32 %v82, 1.442695
    %v86 = vpow.pop %v85
    %v87 = vadd.f32 %v84, 1.0
    %v88 = vlog2.pop %v87
    %v89 = vmul.f32 %v88, 0.6931472
    %v90 = vmul.f32 -0.5, %v84
    %v91 = vadd.f32 %v90, 1.0
    %v92 = vmul.f32 %v91, %v84
    %v93 = vand.u32 2147483647, %v84
    %vm94 = vcmp.lt.f32.partialorder %v93, 0.0004427343
    %v95 = vsel %vm94, %v92, %v89
    %v96 = vadd.f32 %v86, 1.0
    %v97 = vlog2.pop %v96
    %v98 = vmul.f32 %v97, 0.6931472
    %v99 = vmul.f32 -0.5, %v86
    %v100 = vadd.f32 %v99, 1.0
    %v101 = vmul.f32 %v100, %v86
    %v102 = vand.u32 2147483647, %v86
    %vm103 = vcmp.lt.f32.partialorder %v102, 0.0004427343
    %v104 = vsel %vm103, %v101, %v98
    %v105 = vadd.f32 %v77, %v95
    %v106 = vadd.f32 %v78, %v104
    %v107 = vadd.f32 %v105, %v106
    %v108 = vrot.slane %v107, 4
    %v109 = vadd.f32 %v107, %v108
    %v110 = vrot.slane %v109, 2
    %v111 = vadd.f32 %v109, %v110
    %v112 = vrot.slane %v111, 1
    %v113 = vadd.f32 %v111, %v112
    %v114 = vadd.f32 %v73, %v74
    %v115 = vrot.slane %v114, 4
    %v116 = vadd.f32 %v114, %v115
    %v117 = vrot.slane %v116, 2
    %v118 = vadd.f32 %v116, %v117
    %v119 = vrot.slane %v118, 1
    %v120 = vadd.f32 %v118, %v119
    %v121 = vadd.f32 %v65, %v66
    %v122 = vrot.slane %v121, 4
    %v123 = vadd.f32 %v121, %v122
    %v124 = vrot.slane %v123, 2
    %v125 = vadd.f32 %v123, %v124
    %v126 = vrot.slane %v125, 1
    %v127 = vadd.f32 %v125, %v126
    %v128 = vadd.f32 %v71, %v72
    %v129 = vrot.slane %v128, 4
    %v130 = vadd.f32 %v128, %v129
    %v131 = vrot.slane %v130, 2
    %v132 = vadd.f32 %v130, %v131
    %v133 = vrot.slane %v132, 1
    %v134 = vadd.f32 %v132, %v133
    %vm135 = vcmask 1040384
    %v136 = vsel %vm135, %v113, %v120
    %vm137 = vcmask 1041408
    %v138 = vsel %vm137, %v136, %v127
    %vm139 = vcmask 1042432
    %v140 = vsel %vm139, %v138, %v134
    %v141 = vld [vmem:[#allocation7] sm:$0xf]
    %v142 = vadd.f32 %v141, %v140
    %143 = vst [vmem:[#allocation7] sm:$0xf] %v142
    // Predicated region
    $region22: #{tpu_custom_call.1} parent=1 // pred_check
      _
    $region23: #{tpu_custom_call.1} parent=1 // pred_check_branch
      %145 = sbr.rel (0) target = $region25
    $region24: #{tpu_custom_call.1} parent=1 // pred_region
      %s147 = ssub.s32 64, 64
      %148 = vsyncadd [#allocation4], %s147
      %s150 = sshll.u32 [#allocation7], 4
      %s151 = int_to_ptr.vmem [resolvable:$true] %s150
      %153 = dma.vmem_to_hbm [thread:$0]  %s151, 64, %s2, [#allocation4]
    $region25: #{tpu_custom_call.1} parent=1 // pred_fallthru
      _
    // Predicated region
    $region26: #{tpu_custom_call.1} parent=1 // pred_check
      _
    $region27: #{tpu_custom_call.1} parent=1 // pred_check_branch
      %155 = sbr.rel (0) target = $region29
    $region28: #{tpu_custom_call.1} parent=1 // pred_region
      %156 = dma.done [#allocation4], 64
    $region29: #{tpu_custom_call.1} parent=1 // pred_fallthru
      _
    %157 = vsyncpa [#allocation3], 1
    %158 = vsyncpa [#allocation6], 1
    %159 = vsyncpa [#allocation4], 1

</llo_original>
